<compile_context>
chip_gen: v5e
topology: v5e:2x2
jax: 0.10.0
libtpu: 0.0.40
codegen_flags: <defaults>
</compile_context>

<pallas_src>
import functools
import numpy as np

import jax
import jax.numpy as jnp
from jax.experimental import pallas as pl
from jax.experimental.pallas import tpu as pltpu


_NEG_INF = -3.0e38   # finite sentinel for maxpool padding (avoids 0 * inf -> NaN hazards)
_BN_EPS = 1e-5
_VMEM_LIMIT = 48 * 1024 * 1024   # fits v7x (64 MiB physical) with headroom; fine on v5e/v6e


# ----------------------------------------------------------------------------
# Tiling helpers
# ----------------------------------------------------------------------------

def _ceil_to(n, m):
    return ((n + m - 1) // m) * m


def _row_tile(M, cap):
    """Row tile satisfying the (8,128) rule: equals M, or a multiple-of-8 divisor of M <= cap."""
    if M <= cap:
        return M
    t = (cap // 8) * 8
    while t >= 8:
        if M % t == 0:
            return t
        t -= 8
    return M


def _chan_tile(C, cap=512):
    for t in (cap, 256, 128):
        if t <= C and C % t == 0:
            return t
    return C


# ----------------------------------------------------------------------------
# Pallas kernels
# ----------------------------------------------------------------------------

def _matmul_kernel(x_ref, w_ref, b_ref, o_ref, *, act):
    """One (TM, TN) tile of act(X @ W + b); bf16 operands, f32 MXU accumulation."""
    acc = jnp.dot(x_ref[...], w_ref[...], preferred_element_type=jnp.float32)
    acc = acc + b_ref[...]
    if act == "relu":
        acc = jnp.maximum(acc, 0.0)
    elif act == "sigmoid":
        acc = pl.reciprocal(1.0 + jnp.exp(-acc), approx=True)   # EUP exp + EUP reciprocal
    o_ref[...] = acc


@functools.partial(jax.jit, static_argnames=("act",))
def pallas_matmul(x, w, b, act="none"):
    """x:(M,K) @ w:(K,Np) + b:(1,Np). w/b are pre-folded, pre-padded (w bf16, b f32)."""
    M, K = x.shape
    Kw, Np = w.shape
    assert Kw == K, (K, Kw)
    TN = 256 if Np % 256 == 0 else 128          # feed full MXU width on v6e/v7x when possible
    TM = _row_tile(M, 512)
    # keep >= 2 grid points when possible so both TensorCores get work (megacore / v7x)
    if Np // TN == 1 and TM == M and M % 16 == 0:
        TM = M // 2
    grid = (M // TM, Np // TN)
    cost = pl.CostEstimate(
        flops=2 * M * K * Np,
        transcendentals=(M * Np if act == "sigmoid" else 0),
        bytes_accessed=M * K * 2 + K * Np * 2 + Np * 4 + M * Np * 4)
    return pl.pallas_call(
        functools.partial(_matmul_kernel, act=act),
        out_shape=jax.ShapeDtypeStruct((M, Np), jnp.float32),
        grid=grid,
        in_specs=[
            pl.BlockSpec((TM, K), lambda i, j: (i, 0)),
            pl.BlockSpec((K, TN), lambda i, j: (0, j)),
            pl.BlockSpec((1, TN), lambda i, j: (0, j)),
        ],
        out_specs=pl.BlockSpec((TM, TN), lambda i, j: (i, j)),
        compiler_params=pltpu.CompilerParams(
            dimension_semantics=("parallel", "parallel"),
            vmem_limit_bytes=_VMEM_LIMIT),
        cost_estimate=cost,
    )(x.astype(jnp.bfloat16), w, b)


def _dw_kernel(p_ref, w_ref, b_ref, o_ref, *, act):
    """Depthwise 3x3: taps-first (9, TM, TC); unrolled per-tap FMA on dense (TM, TC) slabs."""
    acc = p_ref[0] * w_ref[0:1, :]
    for k in range(1, 9):
        acc = acc + p_ref[k] * w_ref[k:k + 1, :]
    acc = acc + b_ref[...]
    if act == "relu":
        acc = jnp.maximum(acc, 0.0)
    o_ref[...] = acc


@functools.partial(jax.jit, static_argnames=("act",))
def pallas_dwconv(taps, w, b, act="none"):
    KK, M, C = taps.shape
    assert KK == 9
    TC = _chan_tile(C)
    cap = max(8, ((4 * 1024 * 1024) // (KK * TC * 4) // 8) * 8)
    TM = _row_tile(M, min(cap, 512))
    grid = (M // TM, C // TC)
    cost = pl.CostEstimate(
        flops=2 * KK * M * C, transcendentals=0,
        bytes_accessed=KK * M * C * 4 + KK * C * 4 + C * 4 + M * C * 4)
    return pl.pallas_call(
        functools.partial(_dw_kernel, act=act),
        out_shape=jax.ShapeDtypeStruct((M, C), jnp.float32),
        grid=grid,
        in_specs=[
            pl.BlockSpec((KK, TM, TC), lambda i, j: (0, i, j)),
            pl.BlockSpec((KK, TC), lambda i, j: (0, j)),
            pl.BlockSpec((1, TC), lambda i, j: (0, j)),
        ],
        out_specs=pl.BlockSpec((TM, TC), lambda i, j: (i, j)),
        compiler_params=pltpu.CompilerParams(
            dimension_semantics=("parallel", "parallel"),
            vmem_limit_bytes=_VMEM_LIMIT),
        cost_estimate=cost,
    )(taps, w, b)


def _maxpool_kernel(p_ref, o_ref):
    m = p_ref[0]
    for k in range(1, 9):
        m = jnp.maximum(m, p_ref[k])
    o_ref[...] = m


@jax.jit
def pallas_maxpool(taps):
    KK, M, C = taps.shape
    assert KK == 9
    TC = _chan_tile(C)
    cap = max(8, ((4 * 1024 * 1024) // (KK * TC * 4) // 8) * 8)
    TM = _row_tile(M, min(cap, 512))
    grid = (M // TM, C // TC)
    return pl.pallas_call(
        _maxpool_kernel,
        out_shape=jax.ShapeDtypeStruct((M, C), jnp.float32),
        grid=grid,
        in_specs=[pl.BlockSpec((KK, TM, TC), lambda i, j: (0, i, j))],
        out_specs=pl.BlockSpec((TM, TC), lambda i, j: (i, j)),
        compiler_params=pltpu.CompilerParams(
            dimension_semantics=("parallel", "parallel")),
    )(taps)


def _avgpool_kernel(x_ref, o_ref, *, inv_denom):
    o_ref[...] = jnp.sum(x_ref[...], axis=1) * inv_denom


@functools.partial(jax.jit, static_argnames=("denom",))
def pallas_avgpool(x, denom):
    N, HW, C = x.shape
    TC = _chan_tile(C)
    grid = (C // TC,)
    return pl.pallas_call(
        functools.partial(_avgpool_kernel, inv_denom=1.0 / float(denom)),
        out_shape=jax.ShapeDtypeStruct((N, C), jnp.float32),
        grid=grid,
        in_specs=[pl.BlockSpec((N, HW, TC), lambda j: (0, 0, j))],
        out_specs=pl.BlockSpec((N, TC), lambda j: (0, j)),
        compiler_params=pltpu.CompilerParams(dimension_semantics=("parallel",)),
    )(x)


def _scale_kernel(x_ref, g_ref, o_ref):
    o_ref[...] = x_ref[...] * g_ref[...]


@jax.jit
def pallas_scale(x, g):
    """x:(N,HW,C) * g:(N,1,C)  (SE channel gating), tiled over channels."""
    N, HW, C = x.shape
    TC = _chan_tile(C)
    grid = (C // TC,)
    return pl.pallas_call(
        _scale_kernel,
        out_shape=jax.ShapeDtypeStruct((N, HW, C), jnp.float32),
        grid=grid,
        in_specs=[pl.BlockSpec((N, HW, TC), lambda j: (0, 0, j)),
                  pl.BlockSpec((N, 1, TC), lambda j: (0, 0, j))],
        out_specs=pl.BlockSpec((N, HW, TC), lambda j: (0, 0, j)),
        compiler_params=pltpu.CompilerParams(dimension_semantics=("parallel",)),
    )(x, g)


# ----------------------------------------------------------------------------
# Plain-JAX glue (patch extraction, pad/concat/shuffle)
# ----------------------------------------------------------------------------

def extract_patches(x, ksize, stride, padding, pad_value=0.0):
    """x:(N,H,W,C) -> patches (N,Ho,Wo,K*K,C) for im2col matmul convs."""
    N, H, W, C = x.shape
    xp = jnp.pad(x, ((0, 0), (padding, padding), (padding, padding), (0, 0)),
                 constant_values=pad_value)
    Ho = (H + 2 * padding - ksize) // stride + 1
    Wo = (W + 2 * padding - ksize) // stride + 1
    cols = []
    for di in range(ksize):
        for dj in range(ksize):
            cols.append(xp[:, di:di + stride * (Ho - 1) + 1:stride,
                           dj:dj + stride * (Wo - 1) + 1:stride, :])
    return jnp.stack(cols, axis=3), Ho, Wo


def extract_taps(x, ksize, stride, padding, pad_value=0.0):
    """x:(N,H,W,C) -> taps-first (K*K, N, Ho, Wo, C) for depthwise / pooling kernels."""
    N, H, W, C = x.shape
    xp = jnp.pad(x, ((0, 0), (padding, padding), (padding, padding), (0, 0)),
                 constant_values=pad_value)
    Ho = (H + 2 * padding - ksize) // stride + 1
    Wo = (W + 2 * padding - ksize) // stride + 1
    taps = []
    for di in range(ksize):
        for dj in range(ksize):
            taps.append(xp[:, di:di + stride * (Ho - 1) + 1:stride,
                           dj:dj + stride * (Wo - 1) + 1:stride, :])
    return jnp.stack(taps, axis=0), Ho, Wo


def channel_shuffle(x, groups):
    N, H, W, C = x.shape
    x = x.reshape(N, H, W, groups, C // groups)
    x = jnp.transpose(x, (0, 1, 2, 4, 3))
    return x.reshape(N, H, W, C)


def _pad_channels(x, mult=128):
    C = x.shape[-1]
    Cp = _ceil_to(C, mult)
    if Cp == C:
        return x
    return jnp.pad(x, [(0, 0)] * (x.ndim - 1) + [(0, Cp - C)])


# ----------------------------------------------------------------------------
# Layer application (all consume / produce lane-padded NHWC activations)
# ----------------------------------------------------------------------------

def apply_conv_bn(x, p, ksize, stride, padding, act="relu"):
    """ConvBnRelu: conv (no bias) + folded BN (+act) via im2col + Pallas matmul."""
    N, H, W, Cin = x.shape
    if ksize == 1 and stride == 1 and padding == 0:
        A = x.reshape(N * H * W, Cin)
        Ho, Wo = H, W
    else:
        patches, Ho, Wo = extract_patches(x, ksize, stride, padding)
        A = patches.reshape(N * Ho * Wo, ksize * ksize * Cin)
    y = pallas_matmul(A, p["w"], p["b"], act=act)
    return y.reshape(N, Ho, Wo, y.shape[-1])


def apply_dw_bn(x, p, stride, act="none"):
    """3x3 depthwise conv + folded BN (no ReLU, ShuffleNetV2 convention)."""
    N, H, W, C = x.shape
    taps, Ho, Wo = extract_taps(x, 3, stride, 1)
    y = pallas_dwconv(taps.reshape(9, N * Ho * Wo, C), p["w"], p["b"], act=act)
    return y.reshape(N, Ho, Wo, C)


def apply_maxpool(x):
    """MaxPool2d(3, stride=2, padding=1)."""
    N, H, W, C = x.shape
    taps, Ho, Wo = extract_taps(x, 3, 2, 1, pad_value=_NEG_INF)
    y = pallas_maxpool(taps.reshape(9, N * Ho * Wo, C))
    return y.reshape(N, Ho, Wo, C)


def apply_se(x, p):
    """Squeeze-and-Excitation: GAP -> FC/ReLU -> FC/sigmoid -> channel gate (all lane-padded)."""
    N, H, W, C = x.shape
    xf = x.reshape(N, H * W, C)
    pooled = pallas_avgpool(xf, H * W)                          # (N, C)
    h = pallas_matmul(pooled, p["w1"], p["b1"], act="relu")     # (N, hid_p)
    g = pallas_matmul(h, p["w2"], p["b2"], act="sigmoid")       # (N, C)
    y = pallas_scale(xf, g.reshape(N, 1, C))
    return y.reshape(N, H, W, C)


def apply_shuffle_block(x, cfg, p):
    # TODO(synk): ShuffleNetV2ResBlock source is external to the given file; the standard
    #             ShuffleNetV2 unit (channel-split identity branch when stride==1 & in==out,
    #             otherwise two conv branches, concat + channel shuffle, SE on right branch)
    #             is assumed.
    # TODO(synk): fusing the whole branch (conv1->dw->conv2->SE) into one pallas_call with a
    #             VMEM-resident intermediate would remove several HBM round trips per block.
    in_ch, out_ch, stride = cfg["in_ch"], cfg["out_ch"], cfg["stride"]
    if stride == 1 and in_ch == out_ch:
        half = out_ch // 2
        xl = x[..., :half]
        xr = _pad_channels(x[..., half:out_ch])
        r = apply_conv_bn(xr, p["r_conv1"], 1, 1, 0, act="relu")
        r = apply_dw_bn(r, p["r_dw"], 1, act="none")
        r = apply_conv_bn(r, p["r_conv2"], 1, 1, 0, act="relu")
        if "se" in p:
            r = apply_se(r, p["se"])
        out = jnp.concatenate([xl, r[..., :half]], axis=-1)
    else:
        l = apply_dw_bn(x, p["l_dw"], stride, act="none")
        l = apply_conv_bn(l, p["l_conv"], 1, 1, 0, act="relu")
        r = apply_conv_bn(x, p["r_conv1"], 1, 1, 0, act="relu")
        r = apply_dw_bn(r, p["r_dw"], stride, act="none")
        r = apply_conv_bn(r, p["r_conv2"], 1, 1, 0, act="relu")
        if "se" in p:
            r = apply_se(r, p["se"])
        out = jnp.concatenate([l[..., :out_ch], r[..., :out_ch]], axis=-1)
    out = channel_shuffle(out, cfg["groups"])
    return _pad_channels(out)


# ----------------------------------------------------------------------------
# Deterministic parameter construction (mirrors ShuffleResNetV2.__init__)
# BN is folded and weights zero-padded to 128-lane multiples + cast to bf16 at build time.
# ----------------------------------------------------------------------------

def _fold_bn(cout):
    gamma = np.ones((cout,), np.float32)
    beta = np.zeros((cout,), np.float32)
    mean = np.zeros((cout,), np.float32)
    var = np.ones((cout,), np.float32)
    scale = gamma / np.sqrt(var + _BN_EPS)
    bias = beta - mean * scale
    return jnp.asarray(scale), jnp.asarray(bias)


def _init_conv_bn(key, k, cin, cout, cin_pad=None, cout_pad=None):
    cin_pad = cin if cin_pad is None else cin_pad
    cout_pad = _ceil_to(cout, 128) if cout_pad is None else cout_pad
    std = float(np.sqrt(2.0 / (k * k * cin)))
    w = jax.random.normal(key, (k, k, cin, cout), jnp.float32) * std
    scale, bias = _fold_bn(cout)
    wf = w * scale
    w_pad = jnp.zeros((k, k, cin_pad, cout_pad), jnp.float32)
    w_pad = w_pad.at[:, :, :cin, :cout].set(wf)
    b_pad = jnp.zeros((1, cout_pad), jnp.float32).at[0, :cout].set(bias)
    return {"w": w_pad.reshape(k * k * cin_pad, cout_pad).astype(jnp.bfloat16), "b": b_pad}


def _init_dw_bn(key, c, c_pad):
    std = float(np.sqrt(2.0 / 9.0))
    w = jax.random.normal(key, (3, 3, c), jnp.float32) * std
    scale, bias = _fold_bn(c)
    wf = (w * scale).reshape(9, c)
    w_pad = jnp.zeros((9, c_pad), jnp.float32).at[:, :c].set(wf)
    b_pad = jnp.zeros((1, c_pad), jnp.float32).at[0, :c].set(bias)
    return {"w": w_pad, "b": b_pad}


def _init_se(key, c, c_pad, reduction):
    hid = max(1, c // reduction)
    hid_pad = _ceil_to(hid, 128)
    k1, k2 = jax.random.split(key)
    w1 = jax.random.normal(k1, (c, hid), jnp.float32) * float(np.sqrt(2.0 / c))
    w2 = jax.random.normal(k2, (hid, c), jnp.float32) * float(np.sqrt(2.0 / hid))
    w1p = jnp.zeros((c_pad, hid_pad), jnp.float32).at[:c, :hid].set(w1).astype(jnp.bfloat16)
    w2p = jnp.zeros((hid_pad, c_pad), jnp.float32).at[:hid, :c].set(w2).astype(jnp.bfloat16)
    return {"w1": w1p, "b1": jnp.zeros((1, hid_pad), jnp.float32),
            "w2": w2p, "b2": jnp.zeros((1, c_pad), jnp.float32)}


def _init_shuffle_block(key, in_ch, out_ch, stride, shuffle_group, use_se, se_reduction):
    ks = jax.random.split(key, 8)
    in_p = _ceil_to(in_ch, 128)
    p = {}
    if stride == 1 and in_ch == out_ch:
        half = out_ch // 2
        half_p = _ceil_to(half, 128)
        p["r_conv1"] = _init_conv_bn(ks[0], 1, half, half, cin_pad=half_p, cout_pad=half_p)
        p["r_dw"] = _init_dw_bn(ks[1], half, half_p)
        p["r_conv2"] = _init_conv_bn(ks[2], 1, half, half, cin_pad=half_p, cout_pad=half_p)
        branch_c, branch_p = half, half_p
    else:
        out_p = _ceil_to(out_ch, 128)
        p["l_dw"] = _init_dw_bn(ks[0], in_ch, in_p)
        p["l_conv"] = _init_conv_bn(ks[1], 1, in_ch, out_ch, cin_pad=in_p, cout_pad=out_p)
        p["r_conv1"] = _init_conv_bn(ks[2], 1, in_ch, out_ch, cin_pad=in_p, cout_pad=out_p)
        p["r_dw"] = _init_dw_bn(ks[3], out_ch, out_p)
        p["r_conv2"] = _init_conv_bn(ks[4], 1, out_ch, out_ch, cin_pad=out_p, cout_pad=out_p)
        branch_c, branch_p = out_ch, out_p
    if use_se:
        p["se"] = _init_se(ks[5], branch_c, branch_p, se_reduction)
    cfg = {"in_ch": in_ch, "out_ch": out_ch, "stride": stride, "groups": shuffle_group}
    return cfg, p


def build_model(key, height, width, in_channel, class_num, model_arch=50,
                shuffle_group=2, use_se_block=True, se_reduction=16):
    if model_arch == 50:
        block_def = [(244, 4), (488, 4), (976, 6), (1952, 3), (2048, 1)]
    elif model_arch == 164:
        block_def = [(340, 10), (680, 10), (1360, 23), (2720, 10), (2048, 1)]
    else:
        raise ValueError("Support arch [50, 164]")

    keys = list(jax.random.split(key, 256))
    kidx = [0]

    def nkey():
        kidx[0] += 1
        return keys[kidx[0] - 1]

    init = []
    if model_arch == 50:
        init.append(({"k": 3, "stride": 2, "pad": 1},
                     _init_conv_bn(nkey(), 3, in_channel, 64, cin_pad=in_channel)))
        cur = 64
    else:  # 164
        init.append(({"k": 3, "stride": 2, "pad": 1},
                     _init_conv_bn(nkey(), 3, in_channel, 64, cin_pad=in_channel)))
        init.append(({"k": 3, "stride": 1, "pad": 1},
                     _init_conv_bn(nkey(), 3, 64, 64, cin_pad=128)))
        init.append(({"k": 3, "stride": 1, "pad": 1},
                     _init_conv_bn(nkey(), 3, 64, 128, cin_pad=128)))
        cur = 128

    blocks = []
    down_size = 2
    for idx, (out_channel, repeat) in enumerate(block_def[:-1]):
        down_size *= 2
        if idx == 0:
            blocks.append(("maxpool", None, None))
            blocks.append(("shuffle",) + _init_shuffle_block(
                nkey(), cur, out_channel // 2, 1, shuffle_group, use_se_block, se_reduction))
            for _ in range(repeat - 2):
                blocks.append(("shuffle",) + _init_shuffle_block(
                    nkey(), out_channel, out_channel, 1, shuffle_group, use_se_block, se_reduction))
        else:
            blocks.append(("shuffle",) + _init_shuffle_block(
                nkey(), cur, out_channel // 2, 2, shuffle_group, use_se_block, se_reduction))
            for _ in range(repeat - 1):
                blocks.append(("shuffle",) + _init_shuffle_block(
                    nkey(), out_channel, out_channel, 1, shuffle_group, use_se_block, se_reduction))
        cur = out_channel

    last_channel = block_def[-1][0]
    final_conv = _init_conv_bn(nkey(), 1, cur, last_channel,
                               cin_pad=_ceil_to(cur, 128),
                               cout_pad=_ceil_to(last_channel, 128))
    lp = _ceil_to(last_channel, 128)
    class_pad = _ceil_to(class_num, 128)
    pred_w = jax.random.normal(nkey(), (last_channel, class_num), jnp.float32) * float(
        np.sqrt(1.0 / last_channel))
    pred_wp = jnp.zeros((lp, class_pad), jnp.float32).at[:last_channel, :class_num].set(
        pred_w).astype(jnp.bfloat16)
    pred_bp = jnp.zeros((1, class_pad), jnp.float32)
    pool_size = int(np.ceil(height / down_size))

    return {"init": init, "blocks": blocks, "final_conv": final_conv,
            "pred_w": pred_wp, "pred_b": pred_bp,
            "pool_size": pool_size, "class_num": class_num}


# ----------------------------------------------------------------------------
# Forward pass (matches ShuffleResNetV2.forward semantics)
# ----------------------------------------------------------------------------

def forward(model, x_nchw):
    # layout: NCHW input (PyTorch) -> NHWC internally.
    x = jnp.transpose(x_nchw, (0, 2, 3, 1)).astype(jnp.float32)
    for cfg, p in model["init"]:
        x = apply_conv_bn(x, p, cfg["k"], cfg["stride"], cfg["pad"], act="relu")
    for kind, cfg, p in model["blocks"]:
        if kind == "maxpool":
            x = apply_maxpool(x)
        else:
            x = apply_shuffle_block(x, cfg, p)
    x = apply_conv_bn(x, model["final_conv"], 1, 1, 0, act="relu")

    N, H, W, C = x.shape
    ps = model["pool_size"]
    # TODO(synk): AvgPool2d(pool_size, [1,1]) with spatial > pool_size (general PyTorch path)
    #             is not implemented; spatial == pool_size -> global average pooling.
    assert H == ps and W == ps, "demo supports spatial == pool_size (global average pooling)"
    pooled = pallas_avgpool(x.reshape(N, H * W, C), H * W)                 # (N, C)
    logits = pallas_matmul(pooled, model["pred_w"], model["pred_b"], act="none")
    return logits[:, :model["class_num"]]                                  # == out.view(-1, class_num)


# ----------------------------------------------------------------------------
# Demo
# ----------------------------------------------------------------------------

if __name__ == "__main__":
    key = jax.random.PRNGKey(0)
    k_params, k_x = jax.random.split(key)

    BATCH, IN_CH, HEIGHT, WIDTH, NUM_CLASSES = 2, 3, 16, 16, 10
    model = build_model(k_params, HEIGHT, WIDTH, IN_CH, NUM_CLASSES,
                        model_arch=50, shuffle_group=2,
                        use_se_block=True, se_reduction=16)

    x = jax.random.normal(k_x, (BATCH, IN_CH, HEIGHT, WIDTH), jnp.float32)
    out = forward(model, x)
    out = jax.block_until_ready(out)

    assert out.shape == (BATCH, NUM_CLASSES), out.shape
    assert bool(jnp.all(jnp.isfinite(out)))
    print("KERNEL_OK")
</pallas_src>

<mosaic_0001>
module attributes {stable_mosaic.version = 11 : i64} {
  func.func @_matmul_kernel(%arg0: i32, %arg1: i32, %arg2: memref<64x27xbf16, #tpu.memory_space<vmem>>, %arg3: memref<27x128xbf16, #tpu.memory_space<vmem>>, %arg4: memref<1x128xf32, #tpu.memory_space<vmem>>, %arg5: memref<64x128xf32, #tpu.memory_space<vmem>>) attributes {dimension_semantics = [#tpu.dimension_semantics<parallel>, #tpu.dimension_semantics<parallel>], iteration_bounds = array<i64: 2, 1>, scalar_prefetch = 0 : i64, scratch_operands = 0 : i64, tpu.core_type = #tpu.core_type<tc>, window_params = [{transform_indices = @transform_0, window_bounds = array<i64: 64, 27>}, {transform_indices = @transform_1, window_bounds = array<i64: 27, 128>}, {transform_indices = @transform_2, window_bounds = array<i64: 1, 128>}, {transform_indices = @transform_3, window_bounds = array<i64: 64, 128>}]} {
    %c0 = arith.constant 0 : index
    %c0_0 = arith.constant 0 : index
    %0 = vector.load %arg2[%c0, %c0_0] : memref<64x27xbf16, #tpu.memory_space<vmem>>, vector<64x27xbf16>
    %c0_1 = arith.constant 0 : index
    %c0_2 = arith.constant 0 : index
    %1 = vector.load %arg3[%c0_1, %c0_2] : memref<27x128xbf16, #tpu.memory_space<vmem>>, vector<27x128xbf16>
    %cst = arith.constant dense<0.000000e+00> : vector<64x128xf32>
    %2 = tpu.matmul %0, %1, %cst {dimension_numbers = #tpu.dot_dimension_numbers<[1], [0], [0], [1], [0, 0, 1, 1], [], []>} : vector<64x27xbf16>, vector<27x128xbf16>, vector<64x128xf32> -> vector<64x128xf32>
    %c0_3 = arith.constant 0 : index
    %c0_4 = arith.constant 0 : index
    %3 = vector.load %arg4[%c0_3, %c0_4] : memref<1x128xf32, #tpu.memory_space<vmem>>, vector<1x128xf32>
    %4 = vector.broadcast %3 : vector<1x128xf32> to vector<64x128xf32>
    %5 = arith.addf %2, %4 : vector<64x128xf32>
    %cst_5 = arith.constant 0.000000e+00 : f32
    %6 = vector.broadcast %cst_5 : f32 to vector<64x128xf32>
    %7 = arith.maximumf %5, %6 : vector<64x128xf32>
    %c0_6 = arith.constant 0 : index
    %c0_7 = arith.constant 0 : index
    %8 = vector.load %arg5[%c0_6, %c0_7] : memref<64x128xf32, #tpu.memory_space<vmem>>, vector<64x128xf32>
    tpu.vector_store %arg5[%c0_6, %c0_7], %7 {strides = array<i32>} : memref<64x128xf32, #tpu.memory_space<vmem>>, vector<64x128xf32>,
    return
  }
  func.func @transform_0(%arg0: i32, %arg1: i32) -> (i32, i32) {
    %c0_i32 = arith.constant 0 : i32
    %c0_i32_0 = arith.constant 0 : i32
    return %arg0, %c0_i32 : i32, i32
  }
  func.func @transform_1(%arg0: i32, %arg1: i32) -> (i32, i32) {
    %c0_i32 = arith.constant 0 : i32
    %c0_i32_0 = arith.constant 0 : i32
    return %c0_i32, %arg1 : i32, i32
  }
  func.func @transform_2(%arg0: i32, %arg1: i32) -> (i32, i32) {
    %c0_i32 = arith.constant 0 : i32
    %c0_i32_0 = arith.constant 0 : i32
    return %c0_i32, %arg1 : i32, i32
  }
  func.func @transform_3(%arg0: i32, %arg1: i32) -> (i32, i32) {
    %c0_i32 = arith.constant 0 : i32
    return %arg0, %arg1 : i32, i32
  }
}

</mosaic_0001>

<llo_original>
// kernel: pallas_matmul.1
$region0: #{pallas_matmul.1}
  #allocation0 [shape = 'u32[]', space=smem, size = 0x4, offset = 0x4, fixed_abs, tag = 'smem constant byte address 0x4 - core index']
  #allocation1 [shape = 'u32[72,128]{1,0:T(1,128)}', space=vmem, size = 0x9000, scoped, tag = 'internal scratch']
  %s0 = inlined_call_operand.vmem [shape: bf16[128,27], index: 0, kind: input, shape index: {}]
  %s1 = inlined_call_operand.vmem [shape: bf16[27,128], index: 1, kind: input, shape index: {}]
  %s2 = inlined_call_operand.vmem [shape: f32[1,128], index: 2, kind: input, shape index: {}]
  %s3 = inlined_call_operand.hbm [shape: f32[128,128], index: 3, kind: output, shape index: {}]
  %s4 = sld [smem:[#allocation0]]
  $region45: #{pallas_matmul.1} parent=0
    _
  %s6 = ssub.s32 1, %s4
  %s7 = scalar_select 0, %s6, %s4
  $region1: #{pallas_matmul.1} parent=0
    #allocation2 [shape = 'u8[65536]{0}', space=vmem, size = 0x10000, scoped, tag = 'output window, operand 0']
    #allocation3 [shape = 's32[2]{0}', space=sflag, size = 0x8, scoped, tag = 'scoped memory for pallas_matmul.1']
    %8 = vsyncpa [#allocation3], 0
    %s9 = scalar_lea.sflag [#allocation3], 1
    %10 = vsyncpa %s9, 0
    loop: start=0, step=1, limit=4
    $region2: #{pallas_matmul.1} parent=1 // loop_pre_header
      _
    $region3: #{pallas_matmul.1} parent=1 // loop_header
      %s12 = sphi 0, %s16
      %p13 = scmp.ge.s32.totalorder %s12, 4
      %s19 = sphi 0, %s31
      %s20 = sphi 0, %s27
      %s21 = sphi 0, %s19
      %s22 = sphi 0, %s20
      %s23 = sphi 0, %s21
      %s24 = sphi 0, %s22
      %s34 = sphi 0, %s36
      %s37 = sphi 0, %s34
      %s38 = sphi 0, %s37
      %s54 = sphi 0, %s38
      %s60 = sphi 0, %s62
      %s63 = sphi 0, %s60
      %s64 = sphi 0, %s63
      %s80 = sphi 0, %s64
      %s86 = sphi 0, %s88
      %s89 = sphi 0, %s86
      %s90 = sphi 0, %s89
      %s106 = sphi 0, %s90
      %s114 = sphi 0, %s116
      %s117 = sphi 0, %s114
      %s118 = sphi 0, %s117
      %s134 = sphi 0, %s118
    $region4: #{pallas_matmul.1} parent=1 // loop_header_branch
      %15 = sbr.rel (%p13) target = $region8
    $region5: #{pallas_matmul.1} parent=1 // loop_body
      %s17 = ssub.s32 %s12, 1
      %s18 = ssub.s32 %s12, 2
      %s25 = sadd.s32 1, %s20
      %p26 = scmp.ge.s32.totalorder %s25, 1
      %s27 = scalar_select %p26, 0, %s25
      %s28 = sadd.s32 1, %s19
      %s29 = scalar_select %p26, %s28, %s19
      %p30 = scmp.ge.s32.totalorder %s29, 2
      %s31 = scalar_select %p30, 0, %s29
      %s32 = ssub.s32 %s19, %s31
      %p33 = scmp.eq.s32.totalorder %s32, 0
      %s35 = sadd.s32 %s34, 1
      %s36 = scalar_select %p33, %s34, %s35
      %p39 = pneg %p33
      %p40 = scmp.eq.s32.totalorder %s12, 1
      %p41 = por %p39, %p40
      %p42 = scmp.ne.s32.totalorder %s34, %s37
      %p43 = scmp.eq.s32.totalorder %s12, 0
      %p44 = por %p42, %p43
      %p45 = scmp.ne.s32.totalorder %s34, %s37
      %p46 = scmp.eq.s32.totalorder %s17, 1
      %p47 = por %p45, %p46
      %p48 = scmp.ne.s32.totalorder %s37, %s38
      %p49 = scmp.eq.s32.totalorder %s17, 0
      %p50 = por %p48, %p49
      %p51 = scmp.ne.s32.totalorder %s37, %s38
      %p52 = scmp.eq.s32.totalorder %s18, 1
      %p53 = por %p51, %p52
      %p55 = scmp.ne.s32.totalorder %s38, %s54
      %p56 = scmp.eq.s32.totalorder %s18, 0
      %p57 = por %p55, %p56
      %s58 = ssub.s32 %s20, %s27
      %p59 = scmp.eq.s32.totalorder %s58, 0
      %s61 = sadd.s32 %s60, 1
      %s62 = scalar_select %p59, %s60, %s61
      %p65 = pneg %p59
      %p66 = scmp.eq.s32.totalorder %s12, 1
      %p67 = por %p65, %p66
      %p68 = scmp.ne.s32.totalorder %s60, %s63
      %p69 = scmp.eq.s32.totalorder %s12, 0
      %p70 = por %p68, %p69
      %p71 = scmp.ne.s32.totalorder %s60, %s63
      %p72 = scmp.eq.s32.totalorder %s17, 1
      %p73 = por %p71, %p72
      %p74 = scmp.ne.s32.totalorder %s63, %s64
      %p75 = scmp.eq.s32.totalorder %s17, 0
      %p76 = por %p74, %p75
      %p77 = scmp.ne.s32.totalorder %s63, %s64
      %p78 = scmp.eq.s32.totalorder %s18, 1
      %p79 = por %p77, %p78
      %p81 = scmp.ne.s32.totalorder %s64, %s80
      %p82 = scmp.eq.s32.totalorder %s18, 0
      %p83 = por %p81, %p82
      %s84 = ssub.s32 %s20, %s27
      %p85 = scmp.eq.s32.totalorder %s84, 0
      %s87 = sadd.s32 %s86, 1
      %s88 = scalar_select %p85, %s86, %s87
      %p91 = pneg %p85
      %p92 = scmp.eq.s32.totalorder %s12, 1
      %p93 = por %p91, %p92
      %p94 = scmp.ne.s32.totalorder %s86, %s89
      %p95 = scmp.eq.s32.totalorder %s12, 0
      %p96 = por %p94, %p95
      %p97 = scmp.ne.s32.totalorder %s86, %s89
      %p98 = scmp.eq.s32.totalorder %s17, 1
      %p99 = por %p97, %p98
      %p100 = scmp.ne.s32.totalorder %s89, %s90
      %p101 = scmp.eq.s32.totalorder %s17, 0
      %p102 = por %p100, %p101
      %p103 = scmp.ne.s32.totalorder %s89, %s90
      %p104 = scmp.eq.s32.totalorder %s18, 1
      %p105 = por %p103, %p104
      %p107 = scmp.ne.s32.totalorder %s90, %s106
      %p108 = scmp.eq.s32.totalorder %s18, 0
      %p109 = por %p107, %p108
      %s110 = ssub.s32 %s19, %s31
      %s111 = ssub.s32 %s20, %s27
      %s112 = sor.u32 %s110, %s111
      %p113 = scmp.eq.s32.totalorder %s112, 0
      %s115 = sadd.s32 %s114, 1
      %s116 = scalar_select %p113, %s114, %s115
      %p119 = pneg %p113
      %p120 = scmp.eq.s32.totalorder %s12, 1
      %p121 = por %p119, %p120
      %p122 = scmp.ne.s32.totalorder %s114, %s117
      %p123 = scmp.eq.s32.totalorder %s12, 0
      %p124 = por %p122, %p123
      %p125 = scmp.ne.s32.totalorder %s114, %s117
      %p126 = scmp.eq.s32.totalorder %s17, 1
      %p127 = por %p125, %p126
      %p128 = scmp.ne.s32.totalorder %s117, %s118
      %p129 = scmp.eq.s32.totalorder %s17, 0
      %p130 = por %p128, %p129
      %p131 = scmp.ne.s32.totalorder %s117, %s118
      %p132 = scmp.eq.s32.totalorder %s18, 1
      %p133 = por %p131, %p132
      %p135 = scmp.ne.s32.totalorder %s118, %s134
      %p136 = scmp.eq.s32.totalorder %s18, 0
      %p137 = por %p135, %p136
      %p138 = scmp.le.s32.totalorder 1, %s12
      %p139 = scmp.lt.s32.totalorder %s12, 3
      %p140 = pnand %p138, %p139
      %p141 = pneg %p140
      // Predicated region
      $region9: #{pallas_matmul.1} parent=5 // pred_check
        _
      $region10: #{pallas_matmul.1} parent=5 // pred_check_branch
        %143 = sbr.rel (%p140) target = $region12
      $region11: #{pallas_matmul.1} parent=5 // pred_region
        %s144 = ssub.s32 %s12, 1
        // Predicated region
        $region13: #{pallas_matmul.1} parent=11 // pred_check
          %p145 = pneg %p76
        $region14: #{pallas_matmul.1} parent=11 // pred_check_branch
          %147 = sbr.rel (%p145) target = $region16
        $region15: #{pallas_matmul.1} parent=11 // pred_region
          %p148 = scmp.lt.s32.totalorder %s22, 0
          %s149 = scalar_select %p148, %s22, 0
          %s150 = smul.addr %s149, 4
          %s151 = scalar_lea.vmem %s1, %s150
        $region16: #{pallas_matmul.1} parent=11 // pred_fallthru
          _
        // Predicated region
        $region17: #{pallas_matmul.1} parent=11 // pred_check
          %p152 = pneg %p102
        $region18: #{pallas_matmul.1} parent=11 // pred_check_branch
          %154 = sbr.rel (%p152) target = $region20
        $region19: #{pallas_matmul.1} parent=11 // pred_region
          %p155 = scmp.lt.s32.totalorder %s22, 0
          %s156 = scalar_select %p155, %s22, 0
          %s157 = scalar_lea.vmem %s2, %s156
        $region20: #{pallas_matmul.1} parent=11 // pred_fallthru
          _
      $region12: #{pallas_matmul.1} parent=5 // pred_fallthru
        _
      %p158 = scmp.lt.s32.totalorder %s12, 2
      // Predicated region
      $region21: #{pallas_matmul.1} parent=5 // pred_check
        %p159 = pneg %p158
      $region22: #{pallas_matmul.1} parent=5 // pred_check_branch
        %161 = sbr.rel (%p159) target = $region24
      $region23: #{pallas_matmul.1} parent=5 // pred_region
        // Predicated region
        $region25: #{pallas_matmul.1} parent=23 // pred_check
          %p162 = pneg %p44
        $region26: #{pallas_matmul.1} parent=23 // pred_check_branch
          %164 = sbr.rel (%p162) target = $region28
        $region27: #{pallas_matmul.1} parent=23 // pred_region
          %s165 = smul.u32 8, %s19
          %p166 = scmp.lt.s32.totalorder %s165, 15
          %s167 = scalar_select %p166, %s165, 15
          %s168 = smul.addr %s167, 4
          %s169 = scalar_lea.vmem %s0, %s168
          %s170 = smul.u32 8, %s19
        $region28: #{pallas_matmul.1} parent=23 // pred_fallthru
          _
      $region24: #{pallas_matmul.1} parent=5 // pred_fallthru
        _
      %p171 = scmp.le.s32.totalorder 1, %s12
      %p172 = scmp.lt.s32.totalorder %s12, 3
      %p173 = pnand %p171, %p172
      %p174 = pneg %p173
      // Predicated region
      $region29: #{pallas_matmul.1} parent=5 // pred_check
        _
      $region30: #{pallas_matmul.1} parent=5 // pred_check_branch
        %176 = sbr.rel (%p173) target = $region32
      $region31: #{pallas_matmul.1} parent=5 // pred_region
        %s177 = ssub.s32 %s12, 1
        %s178 = smul.u32 8, %s21
        %p179 = scmp.lt.s32.totalorder %s178, 15
        %s180 = scalar_select %p179, %s178, 15
        %s181 = smul.addr %s180, 4
        %s182 = scalar_lea.vmem %s0, %s181
        %p183 = pneg %p50
        %p184 = pneg %p47
        %p185 = scmp.lt.s32.totalorder %s22, 0
        %s186 = scalar_select %p185, %s22, 0
        %s187 = smul.addr %s186, 4
        %s188 = scalar_lea.vmem %s1, %s187
        %p189 = pneg %p76
        %p190 = pneg %p73
        %p191 = scmp.lt.s32.totalorder %s22, 0
        %s192 = scalar_select %p191, %s22, 0
        %s193 = scalar_lea.vmem %s2, %s192
        %p194 = pneg %p102
        %p195 = pneg %p99
        %p196 = pneg %p130
        %p197 = pneg %p127
        %s198 = sand.u32 %s117, 1
        %s199 = scalar_lea.sflag [#allocation3], %s198
        %s200 = sand.u32 %s117, 1
        %s201 = smul.addr %s200, 64
        %s202 = scalar_lea.vmem [#allocation2], %s201
        %s203 = smul.u32 8, %s21
        %p204 = scmp.lt.s32.totalorder %s203, 15
        %s205 = scalar_select %p204, %s203, 15
        %s206 = smul.addr %s205, 4
        %s207 = scalar_lea.vmem %s0, %s206
        %s208 = smul.u32 8, %s21
        %p209 = scmp.lt.s32.totalorder %s22, 0
        %s210 = scalar_select %p209, %s22, 0
        %s211 = smul.addr %s210, 4
        %s212 = scalar_lea.vmem %s1, %s211
        %p213 = scmp.lt.s32.totalorder %s22, 0
        %s214 = scalar_select %p213, %s22, 0
        %s215 = scalar_lea.vmem %s2, %s214
        %s216 = smul.u32 8, %s21
        %v218 = vld [vmem:[%s207] sm:$0xf]
        %v219 = vld [vmem:[%s207 + $0x4] sm:$0xf]
        %v220 = vld [vmem:[%s207 + $0x8] sm:$0xf]
        %v221 = vld [vmem:[%s207 + $0xc] sm:$0xf]
        %v222 = vld [vmem:[%s207 + $0x10] sm:$0xf]
        %v223 = vld [vmem:[%s207 + $0x14] sm:$0xf]
        %v224 = vld [vmem:[%s207 + $0x18] sm:$0xf]
        %v225 = vld [vmem:[%s207 + $0x1c] sm:$0xf]
        %v226 = vld [vmem:[%s212] sm:$0xf]
        %v227 = vld [vmem:[%s212 + $0x4] sm:$0xf]
        %v228 = vld [vmem:[%s212 + $0x8] sm:$0xf]
        %v229 = vld [vmem:[%s212 + $0xc] sm:$0x3]
        %v230 = vld [vmem:[%s215] sm:$0x1]
        %v232 = vperm.slane %v230, 0
        %v242 = vunpack.c.l.b16 %v218
        %v243 = vunpack.c.l.b16 %v219
        %v244 = vunpack.c.l.b16 %v220
        %v245 = vunpack.c.l.b16 %v221
        %v246 = vunpack.c.l.b16 %v222
        %v247 = vunpack.c.l.b16 %v223
        %v248 = vunpack.c.l.b16 %v224
        %v249 = vunpack.c.l.b16 %v225
        %v250 = vpack.c.b16 %v243, %v242
        %v251 = vpack.c.b16 %v245, %v244
        %v252 = vpack.c.b16 %v247, %v246
        %v253 = vpack.c.b16 %v249, %v248
        %v258 = vunpack.c.l.b16 %v226
        %v259 = vunpack.c.l.b16 %v227
        %v260 = vunpack.c.l.b16 %v228
        %v261 = vunpack.c.l.b16 %v229
        %v262 = vpack.c.b16 %v259, %v258
        %v263 = vpack.c.b16 %v261, %v260
        %vm265 = vcmask 220160
        %v267 = vsel %vm265, %v250, 0
        %v270 = vsel %vm265, %v251, 0
        %v273 = vsel %vm265, %v252, 0
        %v276 = vsel %vm265, %v253, 0
        %vm278 = vcmask 1044480
        %vm279 = vcmask 1045504
        %v280 = vsel %vm278, 4294967295, 65535
        %v281 = vsel %vm279, %v280, 0
        %v283 = vand.u32 %v263, %v281
        %285 = vmatpush.bf16.msra.mxu0 0
        %286 = vmatpush.bf16.msra.mxu0 0
        %287 = vmatpush.bf16.msra.mxu0 0
        %288 = vmatpush.bf16.msra.mxu0 0
        %289 = vmatpush.bf16.msra.mxu0 0
        %290 = vmatpush.bf16.msra.mxu0 0
        %291 = vmatpush.bf16.msra.mxu0 %v283
        %292 = vmatpush.bf16.msra.mxu0 %v262
        %293 = vmatmul.bf16.gmra.mxu0 %v267
        %v294 = vpop.f32.mrf.mxu0
        %v295 = vadd.f32 %v232, %v294
        %v296 = vpop.f32.mrf.mxu0
        %v297 = vadd.f32 %v232, %v296
        %298 = vmatmul.bf16.gmra.mxu0 %v270
        %v299 = vpop.f32.mrf.mxu0
        %v300 = vadd.f32 %v232, %v299
        %v301 = vpop.f32.mrf.mxu0
        %v302 = vadd.f32 %v232, %v301
        %303 = vmatmul.bf16.gmra.mxu0 %v273
        %v304 = vpop.f32.mrf.mxu0
        %v305 = vadd.f32 %v232, %v304
        %v306 = vpop.f32.mrf.mxu0
        %v307 = vadd.f32 %v232, %v306
        %308 = vmatmul.bf16.gmra.mxu0 %v276
        %v309 = vpop.f32.mrf.mxu0
        %v310 = vadd.f32 %v232, %v309
        %v311 = vpop.f32.mrf.mxu0
        %v312 = vadd.f32 %v232, %v311
        %313 = vdwg.mxu0
        %v314 = vmax.f32 %v295, 0.0
        %v315 = vmax.f32 %v297, 0.0
        %v316 = vmax.f32 %v300, 0.0
        %v317 = vmax.f32 %v302, 0.0
        %v318 = vmax.f32 %v305, 0.0
        %v319 = vmax.f32 %v307, 0.0
        %v320 = vmax.f32 %v310, 0.0
        %v321 = vmax.f32 %v312, 0.0
        %322 = vst [vmem:[%s202] sm:$0xff] %v314
        %323 = vst [vmem:[%s202 + $0x8] sm:$0xff] %v315
        %324 = vst [vmem:[%s202 + $0x10] sm:$0xff] %v316
        %325 = vst [vmem:[%s202 + $0x18] sm:$0xff] %v317
        %326 = vst [vmem:[%s202 + $0x20] sm:$0xff] %v318
        %327 = vst [vmem:[%s202 + $0x28] sm:$0xff] %v319
        %328 = vst [vmem:[%s202 + $0x30] sm:$0xff] %v320
        %329 = vst [vmem:[%s202 + $0x38] sm:$0xff] %v321
        %s330 = sand.u32 %s117, 1
        %s331 = scalar_lea.sflag [#allocation3], %s330
        %s332 = sand.u32 %s117, 1
        %s333 = smul.addr %s332, 64
        %s334 = scalar_lea.vmem [#allocation2], %s333
        // Predicated region
        $region33: #{pallas_matmul.1} parent=31 // pred_check
          %p335 = pneg %p127
        $region34: #{pallas_matmul.1} parent=31 // pred_check_branch
          %337 = sbr.rel (%p335) target = $region36
        $region35: #{pallas_matmul.1} parent=31 // pred_region
          %s338 = smul.u32 8, %s21
          %340 = vsyncadd %s331, 0
          %s341 = sadd.s32 %s22, %s338
          %s342 = smul.addr %s341, 8
          %s343 = scalar_lea.hbm %s3, %s342
          %s344 = sshll.u32 %s334, 4
          %s345 = int_to_ptr.vmem [resolvable:$true] %s344
          %s346 = sshll.u32 %s343, 4
          %s347 = int_to_ptr.hbm [resolvable:$true] %s346
          %352 = dma.vmem_to_hbm [thread:$0]  %s345, 1024, %s347, %s331, 128, 128, 8
        $region36: #{pallas_matmul.1} parent=31 // pred_fallthru
          _
      $region32: #{pallas_matmul.1} parent=5 // pred_fallthru
        _
      %p353 = scmp.le.s32.totalorder 2, %s12
      // Predicated region
      $region37: #{pallas_matmul.1} parent=5 // pred_check
        %p354 = pneg %p353
      $region38: #{pallas_matmul.1} parent=5 // pred_check_branch
        %356 = sbr.rel (%p354) target = $region40
      $region39: #{pallas_matmul.1} parent=5 // pred_region
        %s357 = ssub.s32 %s12, 2
        // Predicated region
        $region41: #{pallas_matmul.1} parent=39 // pred_check
          %p358 = pneg %p133
        $region42: #{pallas_matmul.1} parent=39 // pred_check_branch
          %360 = sbr.rel (%p358) target = $region44
        $region43: #{pallas_matmul.1} parent=39 // pred_region
          %s361 = sand.u32 %s118, 1
          %s362 = scalar_lea.sflag [#allocation3], %s361
          %s363 = sand.u32 %s118, 1
          %s364 = smul.addr %s363, 64
          %s365 = scalar_lea.vmem [#allocation2], %s364
          %367 = dma.done %s362, 1024
        $region44: #{pallas_matmul.1} parent=39 // pred_fallthru
          _
      $region40: #{pallas_matmul.1} parent=5 // pred_fallthru
        _
    $region6: #{pallas_matmul.1} parent=1 // loop_footer
      %s16 = sadd.s32 1, %s12
    $region7: #{pallas_matmul.1} parent=1 // loop_footer_branch
      %11 = sbr.rel target = $region3
    $region8: #{pallas_matmul.1} parent=1 // loop_exit
      _
    %368 = vsyncpa [#allocation3], 1
    %s369 = scalar_lea.sflag [#allocation3], 1
    %370 = vsyncpa %s369, 1

</llo_original>
